<compile_context>
chip_gen: v5e
topology: v5e:2x2
jax: 0.10.0
libtpu: 0.0.40
codegen_flags: <defaults>
</compile_context>

<pallas_src>
import functools

import jax
import jax.numpy as jnp
from jax.experimental import pallas as pl
from jax.experimental.pallas import tpu as pltpu

D = 26          # 2 boxes * 5 + 16 classes
INV7 = 1.0 / 7.0


def _round_up(x, m):
    return ((x + m - 1) // m) * m


# ----------------------------------------------------------------------------
# Kernel-side math: channel-major (D, L) layout, everything is a (1, L) row.
# ----------------------------------------------------------------------------
def _lane_loss_terms(pred, lab):
    """Per-lane (per-cell) loss terms for a (D, L) block.

    Returns four (1, L) rows: coord, obj, noobj, class contributions per cell.
    """
    conf = lab[4:5, :]
    cmask = conf > 0.0        # object cells
    nmask = conf == 0.0       # no-object cells (zero-padded lanes land here)
    zero = jnp.zeros_like(conf)

    p1x, p1y, p1w, p1h, p1c = pred[0:1], pred[1:2], pred[2:3], pred[3:4], pred[4:5]
    p2x, p2y, p2w, p2h, p2c = pred[5:6], pred[6:7], pred[7:8], pred[8:9], pred[9:10]
    lx, ly, lw, lh = lab[0:1], lab[1:2], lab[2:3], lab[3:4]

    # --- no-object confidence loss (base term: both confidences vs 0) -------
    noobj_lane = jnp.where(nmask, p1c * p1c + p2c * p2c, zero)

    # --- class loss over object cells (16 sublane rows) ---------------------
    cdiff = pred[10:26, :] - lab[10:26, :]
    class_lane = jnp.where(cmask, jnp.sum(cdiff * cdiff, axis=0, keepdims=True), zero)

    # --- IoU of each predicted box against the label box --------------------
    # Algebraic simplification of the reference IoU(): the /7 offsets cancel
    # in the areas (area = w*h) and x/7 is a multiply by a 1/7 constant.
    lx7 = lx * INV7
    ly7 = ly * INV7
    b2x1 = lx7 - 0.5 * lw
    b2x2 = lx7 + 0.5 * lw
    b2y1 = ly7 - 0.5 * lh
    b2y2 = ly7 + 0.5 * lh
    s2 = lw * lh

    def iou(px, py, pw, ph):
        px7 = px * INV7
        py7 = py * INV7
        b1x1 = px7 - 0.5 * pw
        b1x2 = px7 + 0.5 * pw
        b1y1 = py7 - 0.5 * ph
        b1y2 = py7 + 0.5 * ph
        left = jnp.maximum(b1x1, b2x1)
        right = jnp.minimum(b1x2, b2x2)
        top = jnp.maximum(b1y1, b2y1)
        bottom = jnp.minimum(b1y2, b2y2)
        valid = (left < right) & (top < bottom)
        inter = (right - left) * (bottom - top)
        union = pw * ph + s2 - inter
        return jnp.where(valid, inter / jnp.where(valid, union, 1.0), zero)

    iou1 = iou(p1x, p1y, p1w, p1h)
    iou2 = iou(p2x, p2y, p2w, p2h)
    choose1 = iou1 > iou2

    sqrt_lw = jnp.sqrt(lw)
    sqrt_lh = jnp.sqrt(lh)
    coord1 = ((p1x - lx) ** 2 + (p1y - ly) ** 2
              + (jnp.sqrt(p1w) - sqrt_lw) ** 2 + (jnp.sqrt(p1h) - sqrt_lh) ** 2)
    coord2 = ((p2x - lx) ** 2 + (p2y - ly) ** 2
              + (jnp.sqrt(p2w) - sqrt_lw) ** 2 + (jnp.sqrt(p2h) - sqrt_lh) ** 2)
    obj1 = (p1c - iou1) ** 2
    obj2 = (p2c - iou2) ** 2
    nob1 = p2c * p2c     # box 1 responsible -> the other confidence is penalized
    nob2 = p1c * p1c

    coord_lane = jnp.where(cmask, jnp.where(choose1, coord1, coord2), zero)
    obj_lane = jnp.where(cmask, jnp.where(choose1, obj1, obj2), zero)
    noobj_lane = noobj_lane + jnp.where(cmask, jnp.where(choose1, nob1, nob2), zero)
    return coord_lane, obj_lane, noobj_lane, class_lane


def _yolo_loss_kernel(pred_ref, lab_ref, out_ref, acc_ref, *,
                      l_coord, l_noobj, inv_n):
    i = pl.program_id(1)

    @pl.when(i == 0)
    def _init():
        acc_ref[...] = jnp.zeros_like(acc_ref)

    pred = pred_ref[...].astype(jnp.float32)     # (D, TL)
    lab = lab_ref[...].astype(jnp.float32)

    coord_l, obj_l, noobj_l, class_l = _lane_loss_terms(pred, lab)
    acc_ref[...] += l_coord * coord_l + obj_l + l_noobj * noobj_l + class_l

    # Epilogue: one cross-lane reduce + scaling, single scalar store per core.
    @pl.when(i == pl.num_programs(1) - 1)
    def _finalize():
        total = jnp.sum(acc_ref[...], axis=1, keepdims=True) * inv_n   # (1, 1)
        out_ref[...] = total.reshape(1, 1, 1)


def yolo_loss(predict, label, l_coord=5.0, l_noobj=0.5, *, lane_tile=2048):
    """Pallas implementation of YoloLoss(l_coord, l_noobj).forward."""
    N = predict.shape[0]
    pred2 = predict.reshape(-1, D)
    lab2 = label.reshape(-1, D)
    M = pred2.shape[0]

    # Lane-dense layout: channels on sublanes, grid cells on lanes.
    pred_t = pred2.T          # (D, M), native dtype (cast happens in-kernel)
    lab_t = lab2.T

    tl = min(lane_tile, _round_up(M, 128))       # lane tile, multiple of 128
    n_tiles = _round_up(M, tl) // tl
    nc = 2 if n_tiles >= 2 else 1                # shard cells across v7x's 2 TCs
    mp = _round_up(M, nc * tl)
    if mp != M:
        # Zero padding: conf == 0 -> padded lanes fall into the no-object mask
        # with all-zero predictions, so they contribute exactly 0.
        pad = mp - M
        pred_t = jnp.pad(pred_t, ((0, 0), (0, pad)))
        lab_t = jnp.pad(lab_t, ((0, 0), (0, pad)))
    tiles_per_core = mp // (nc * tl)

    kernel = functools.partial(
        _yolo_loss_kernel,
        l_coord=float(l_coord),
        l_noobj=float(l_noobj),
        inv_n=1.0 / float(N),
    )
    partials = pl.pallas_call(
        kernel,
        out_shape=jax.ShapeDtypeStruct((nc, 1, 1), jnp.float32),
        grid_spec=pltpu.PrefetchScalarGridSpec(
            num_scalar_prefetch=0,
            grid=(nc, tiles_per_core),
            in_specs=[
                pl.BlockSpec((D, tl), lambda c, i: (0, c * tiles_per_core + i)),
                pl.BlockSpec((D, tl), lambda c, i: (0, c * tiles_per_core + i)),
            ],
            out_specs=pl.BlockSpec((1, 1, 1), lambda c, i: (c, 0, 0)),
            scratch_shapes=[pltpu.VMEM((1, tl), jnp.float32)],
        ),
        compiler_params=pltpu.CompilerParams(
            dimension_semantics=("parallel", "arbitrary")),
    )(pred_t, lab_t)
    return jnp.sum(partials)


# ----------------------------------------------------------------------------
# Pure-JAX reference (row layout, same math as the PyTorch forward).
# ----------------------------------------------------------------------------
def _iou_ref(px, py, pw, ph, lx, ly, lw, lh):
    b1x1 = px / 7.0 - pw / 2.0
    b1y1 = py / 7.0 - ph / 2.0
    b1x2 = px / 7.0 + pw / 2.0
    b1y2 = py / 7.0 + ph / 2.0
    b2x1 = lx / 7.0 - lw / 2.0
    b2y1 = ly / 7.0 - lh / 2.0
    b2x2 = lx / 7.0 + lw / 2.0
    b2y2 = ly / 7.0 + lh / 2.0
    s1 = (b1x2 - b1x1) * (b1y2 - b1y1)
    s2 = (b2x2 - b2x1) * (b2y2 - b2y1)
    left = jnp.maximum(b1x1, b2x1)
    right = jnp.minimum(b1x2, b2x2)
    top = jnp.maximum(b1y1, b2y1)
    bottom = jnp.minimum(b1y2, b2y2)
    valid = (left < right) & (top < bottom)
    inter = (right - left) * (bottom - top)
    union = s1 + s2 - inter
    return jnp.where(valid, inter / jnp.where(valid, union, 1.0), 0.0)


def yolo_loss_ref(predict, label, l_coord=5.0, l_noobj=0.5):
    N = predict.shape[0]
    pred = predict.reshape(-1, D).astype(jnp.float32)
    lab = label.reshape(-1, D).astype(jnp.float32)

    conf = lab[:, 4:5]
    cmask = conf > 0.0
    nmask = conf == 0.0
    zero = jnp.zeros_like(conf)

    noobj_base = jnp.where(nmask, pred[:, 4:5] ** 2 + pred[:, 9:10] ** 2, zero)
    class_sq = jnp.sum((pred[:, 10:] - lab[:, 10:]) ** 2, axis=1, keepdims=True)
    class_loss = jnp.sum(jnp.where(cmask, class_sq, zero))

    lx, ly, lw, lh = lab[:, 0:1], lab[:, 1:2], lab[:, 2:3], lab[:, 3:4]
    iou1 = _iou_ref(pred[:, 0:1], pred[:, 1:2], pred[:, 2:3], pred[:, 3:4], lx, ly, lw, lh)
    iou2 = _iou_ref(pred[:, 5:6], pred[:, 6:7], pred[:, 7:8], pred[:, 8:9], lx, ly, lw, lh)
    choose1 = iou1 > iou2

    coord1 = ((pred[:, 0:1] - lx) ** 2 + (pred[:, 1:2] - ly) ** 2
              + (jnp.sqrt(pred[:, 2:3]) - jnp.sqrt(lw)) ** 2
              + (jnp.sqrt(pred[:, 3:4]) - jnp.sqrt(lh)) ** 2)
    coord2 = ((pred[:, 5:6] - lx) ** 2 + (pred[:, 6:7] - ly) ** 2
              + (jnp.sqrt(pred[:, 7:8]) - jnp.sqrt(lw)) ** 2
              + (jnp.sqrt(pred[:, 8:9]) - jnp.sqrt(lh)) ** 2)
    obj1 = (pred[:, 4:5] - iou1) ** 2
    obj2 = (pred[:, 9:10] - iou2) ** 2
    noobj1 = pred[:, 9:10] ** 2
    noobj2 = pred[:, 4:5] ** 2

    coord_loss = jnp.sum(jnp.where(cmask, jnp.where(choose1, coord1, coord2), zero))
    obj_loss = jnp.sum(jnp.where(cmask, jnp.where(choose1, obj1, obj2), zero))
    noobj_loss = jnp.sum(noobj_base) + jnp.sum(
        jnp.where(cmask, jnp.where(choose1, noobj1, noobj2), zero))
    return (l_coord * coord_loss + obj_loss + l_noobj * noobj_loss + class_loss) / N


if __name__ == "__main__":
    key = jax.random.PRNGKey(0)
    N, S = 2, 7  # YOLO grid is 7x7 (IoU divides x,y by 7)
    k1, k2, k3, k4 = jax.random.split(key, 4)

    # predictions strictly positive so sqrt(w), sqrt(h) are well defined,
    # matching the reference's assumptions.
    predict = jax.random.uniform(k1, (N, S, S, D), jnp.float32, 0.05, 1.0)

    conf = (jax.random.uniform(k2, (N, S, S)) > 0.5).astype(jnp.float32)
    boxes_xy = jax.random.uniform(k3, (N, S, S, 2), jnp.float32, 0.0, 7.0)
    boxes_wh = jax.random.uniform(k4, (N, S, S, 2), jnp.float32, 0.1, 1.0)
    classes = jax.nn.one_hot(jax.random.randint(k2, (N, S, S), 0, 16), 16,
                             dtype=jnp.float32)
    label = jnp.concatenate(
        [boxes_xy, boxes_wh, conf[..., None],
         jnp.zeros((N, S, S, 5), jnp.float32), classes], axis=-1)
    # only the confidence cell matters for no-object cells; zero the rest.
    label = label * conf[..., None]

    l_coord, l_noobj = 5.0, 0.5
    loss = yolo_loss(predict, label, l_coord, l_noobj)
    jax.block_until_ready(loss)

    ref = yolo_loss_ref(predict, label, l_coord, l_noobj)
    assert jnp.allclose(loss, ref, rtol=2e-4, atol=1e-3), (loss, ref)

    print("KERNEL_OK")
</pallas_src>

<mosaic_0001>
module attributes {stable_mosaic.version = 11 : i64} {
  func.func @_yolo_loss_kernel(%arg0: i32, %arg1: i32, %arg2: memref<26x128xf32, #tpu.memory_space<vmem>>, %arg3: memref<26x128xf32, #tpu.memory_space<vmem>>, %arg4: memref<1x1x1xf32, #tpu.memory_space<vmem>>, %arg5: memref<1x128xf32, #tpu.memory_space<vmem>>) attributes {dimension_semantics = [#tpu.dimension_semantics<parallel>, #tpu.dimension_semantics<arbitrary>], iteration_bounds = array<i64: 1, 1>, scalar_prefetch = 0 : i64, scratch_operands = 1 : i64, tpu.core_type = #tpu.core_type<tc>, window_params = [{transform_indices = @transform_0, window_bounds = array<i64: 26, 128>}, {transform_indices = @transform_1, window_bounds = array<i64: 26, 128>}, {transform_indices = @transform_2, window_bounds = array<i64: 1, 1, 1>}]} {
    %c0_i32 = arith.constant 0 : i32
    %0 = arith.cmpi eq, %arg1, %c0_i32 : i32
    %1 = arith.extui %0 : i1 to i32
    %c0_i32_0 = arith.constant 0 : i32
    %2 = arith.cmpi ne, %1, %c0_i32_0 : i32
    scf.if %2 {
      %cst_35 = arith.constant 0.000000e+00 : f32
      %174 = vector.broadcast %cst_35 : f32 to vector<1x128xf32>
      %c0_36 = arith.constant 0 : index
      %c0_37 = arith.constant 0 : index
      %175 = vector.load %arg5[%c0_36, %c0_37] : memref<1x128xf32, #tpu.memory_space<vmem>>, vector<1x128xf32>
      tpu.vector_store %arg5[%c0_36, %c0_37], %174 {strides = array<i32>} : memref<1x128xf32, #tpu.memory_space<vmem>>, vector<1x128xf32>,
    } else {
    }
    %c0 = arith.constant 0 : index
    %c0_1 = arith.constant 0 : index
    %3 = vector.load %arg2[%c0, %c0_1] : memref<26x128xf32, #tpu.memory_space<vmem>>, vector<26x128xf32>
    %c0_2 = arith.constant 0 : index
    %c0_3 = arith.constant 0 : index
    %4 = vector.load %arg3[%c0_2, %c0_3] : memref<26x128xf32, #tpu.memory_space<vmem>>, vector<26x128xf32>
    %5 = vector.extract_strided_slice %4 {offsets = [4, 0], sizes = [1, 128], strides = [1, 1]} : vector<26x128xf32> to vector<1x128xf32>
    %cst = arith.constant 0.000000e+00 : f32
    %6 = vector.broadcast %cst : f32 to vector<1x128xf32>
    %7 = arith.cmpf ogt, %5, %6 : vector<1x128xf32>
    %cst_4 = arith.constant 0.000000e+00 : f32
    %8 = vector.broadcast %cst_4 : f32 to vector<1x128xf32>
    %9 = arith.cmpf oeq, %5, %8 : vector<1x128xf32>
    %cst_5 = arith.constant 0.000000e+00 : f32
    %10 = vector.broadcast %cst_5 : f32 to vector<1x128xf32>
    %11 = vector.extract_strided_slice %3 {offsets = [0, 0], sizes = [1, 128], strides = [1, 1]} : vector<26x128xf32> to vector<1x128xf32>
    %12 = vector.extract_strided_slice %3 {offsets = [1, 0], sizes = [1, 128], strides = [1, 1]} : vector<26x128xf32> to vector<1x128xf32>
    %13 = vector.extract_strided_slice %3 {offsets = [2, 0], sizes = [1, 128], strides = [1, 1]} : vector<26x128xf32> to vector<1x128xf32>
    %14 = vector.extract_strided_slice %3 {offsets = [3, 0], sizes = [1, 128], strides = [1, 1]} : vector<26x128xf32> to vector<1x128xf32>
    %15 = vector.extract_strided_slice %3 {offsets = [4, 0], sizes = [1, 128], strides = [1, 1]} : vector<26x128xf32> to vector<1x128xf32>
    %16 = vector.extract_strided_slice %3 {offsets = [5, 0], sizes = [1, 128], strides = [1, 1]} : vector<26x128xf32> to vector<1x128xf32>
    %17 = vector.extract_strided_slice %3 {offsets = [6, 0], sizes = [1, 128], strides = [1, 1]} : vector<26x128xf32> to vector<1x128xf32>
    %18 = vector.extract_strided_slice %3 {offsets = [7, 0], sizes = [1, 128], strides = [1, 1]} : vector<26x128xf32> to vector<1x128xf32>
    %19 = vector.extract_strided_slice %3 {offsets = [8, 0], sizes = [1, 128], strides = [1, 1]} : vector<26x128xf32> to vector<1x128xf32>
    %20 = vector.extract_strided_slice %3 {offsets = [9, 0], sizes = [1, 128], strides = [1, 1]} : vector<26x128xf32> to vector<1x128xf32>
    %21 = vector.extract_strided_slice %4 {offsets = [0, 0], sizes = [1, 128], strides = [1, 1]} : vector<26x128xf32> to vector<1x128xf32>
    %22 = vector.extract_strided_slice %4 {offsets = [1, 0], sizes = [1, 128], strides = [1, 1]} : vector<26x128xf32> to vector<1x128xf32>
    %23 = vector.extract_strided_slice %4 {offsets = [2, 0], sizes = [1, 128], strides = [1, 1]} : vector<26x128xf32> to vector<1x128xf32>
    %24 = vector.extract_strided_slice %4 {offsets = [3, 0], sizes = [1, 128], strides = [1, 1]} : vector<26x128xf32> to vector<1x128xf32>
    %25 = arith.mulf %15, %15 : vector<1x128xf32>
    %26 = arith.mulf %20, %20 : vector<1x128xf32>
    %27 = arith.addf %25, %26 : vector<1x128xf32>
    %28 = arith.select %9, %27, %10 : vector<1x128xi1>, vector<1x128xf32>
    %29 = vector.extract_strided_slice %3 {offsets = [10, 0], sizes = [16, 128], strides = [1, 1]} : vector<26x128xf32> to vector<16x128xf32>
    %30 = vector.extract_strided_slice %4 {offsets = [10, 0], sizes = [16, 128], strides = [1, 1]} : vector<26x128xf32> to vector<16x128xf32>
    %31 = arith.subf %29, %30 : vector<16x128xf32>
    %32 = arith.mulf %31, %31 : vector<16x128xf32>
    %cst_6 = arith.constant dense<0.000000e+00> : vector<128xf32>
    %33 = vector.multi_reduction <add>, %32, %cst_6 [0] : vector<16x128xf32> to vector<128xf32>
    %34 = vector.shape_cast %33 : vector<128xf32> to vector<1x128xf32>
    %35 = arith.select %7, %34, %10 : vector<1x128xi1>, vector<1x128xf32>
    %cst_7 = arith.constant 0.142857149 : f32
    %36 = vector.broadcast %cst_7 : f32 to vector<1x128xf32>
    %37 = arith.mulf %21, %36 : vector<1x128xf32>
    %cst_8 = arith.constant 0.142857149 : f32
    %38 = vector.broadcast %cst_8 : f32 to vector<1x128xf32>
    %39 = arith.mulf %22, %38 : vector<1x128xf32>
    %cst_9 = arith.constant 5.000000e-01 : f32
    %40 = vector.broadcast %cst_9 : f32 to vector<1x128xf32>
    %41 = arith.mulf %40, %23 : vector<1x128xf32>
    %42 = arith.subf %37, %41 : vector<1x128xf32>
    %cst_10 = arith.constant 5.000000e-01 : f32
    %43 = vector.broadcast %cst_10 : f32 to vector<1x128xf32>
    %44 = arith.mulf %43, %23 : vector<1x128xf32>
    %45 = arith.addf %37, %44 : vector<1x128xf32>
    %cst_11 = arith.constant 5.000000e-01 : f32
    %46 = vector.broadcast %cst_11 : f32 to vector<1x128xf32>
    %47 = arith.mulf %46, %24 : vector<1x128xf32>
    %48 = arith.subf %39, %47 : vector<1x128xf32>
    %cst_12 = arith.constant 5.000000e-01 : f32
    %49 = vector.broadcast %cst_12 : f32 to vector<1x128xf32>
    %50 = arith.mulf %49, %24 : vector<1x128xf32>
    %51 = arith.addf %39, %50 : vector<1x128xf32>
    %52 = arith.mulf %23, %24 : vector<1x128xf32>
    %cst_13 = arith.constant 0.142857149 : f32
    %53 = vector.broadcast %cst_13 : f32 to vector<1x128xf32>
    %54 = arith.mulf %11, %53 : vector<1x128xf32>
    %cst_14 = arith.constant 0.142857149 : f32
    %55 = vector.broadcast %cst_14 : f32 to vector<1x128xf32>
    %56 = arith.mulf %12, %55 : vector<1x128xf32>
    %cst_15 = arith.constant 5.000000e-01 : f32
    %57 = vector.broadcast %cst_15 : f32 to vector<1x128xf32>
    %58 = arith.mulf %57, %13 : vector<1x128xf32>
    %59 = arith.subf %54, %58 : vector<1x128xf32>
    %cst_16 = arith.constant 5.000000e-01 : f32
    %60 = vector.broadcast %cst_16 : f32 to vector<1x128xf32>
    %61 = arith.mulf %60, %13 : vector<1x128xf32>
    %62 = arith.addf %54, %61 : vector<1x128xf32>
    %cst_17 = arith.constant 5.000000e-01 : f32
    %63 = vector.broadcast %cst_17 : f32 to vector<1x128xf32>
    %64 = arith.mulf %63, %14 : vector<1x128xf32>
    %65 = arith.subf %56, %64 : vector<1x128xf32>
    %cst_18 = arith.constant 5.000000e-01 : f32
    %66 = vector.broadcast %cst_18 : f32 to vector<1x128xf32>
    %67 = arith.mulf %66, %14 : vector<1x128xf32>
    %68 = arith.addf %56, %67 : vector<1x128xf32>
    %69 = arith.maximumf %59, %42 : vector<1x128xf32>
    %70 = arith.minimumf %62, %45 : vector<1x128xf32>
    %71 = arith.maximumf %65, %48 : vector<1x128xf32>
    %72 = arith.minimumf %68, %51 : vector<1x128xf32>
    %73 = arith.cmpf olt, %69, %70 : vector<1x128xf32>
    %74 = arith.cmpf olt, %71, %72 : vector<1x128xf32>
    %75 = arith.andi %73, %74 : vector<1x128xi1>
    %76 = arith.subf %70, %69 : vector<1x128xf32>
    %77 = arith.subf %72, %71 : vector<1x128xf32>
    %78 = arith.mulf %76, %77 : vector<1x128xf32>
    %79 = arith.mulf %13, %14 : vector<1x128xf32>
    %80 = arith.addf %79, %52 : vector<1x128xf32>
    %81 = arith.subf %80, %78 : vector<1x128xf32>
    %cst_19 = arith.constant 1.000000e+00 : f32
    %82 = vector.broadcast %cst_19 : f32 to vector<1x128xf32>
    %83 = arith.select %75, %81, %82 : vector<1x128xi1>, vector<1x128xf32>
    %84 = arith.divf %78, %83 : vector<1x128xf32>
    %85 = arith.select %75, %84, %10 : vector<1x128xi1>, vector<1x128xf32>
    %cst_20 = arith.constant 0.142857149 : f32
    %86 = vector.broadcast %cst_20 : f32 to vector<1x128xf32>
    %87 = arith.mulf %16, %86 : vector<1x128xf32>
    %cst_21 = arith.constant 0.142857149 : f32
    %88 = vector.broadcast %cst_21 : f32 to vector<1x128xf32>
    %89 = arith.mulf %17, %88 : vector<1x128xf32>
    %cst_22 = arith.constant 5.000000e-01 : f32
    %90 = vector.broadcast %cst_22 : f32 to vector<1x128xf32>
    %91 = arith.mulf %90, %18 : vector<1x128xf32>
    %92 = arith.subf %87, %91 : vector<1x128xf32>
    %cst_23 = arith.constant 5.000000e-01 : f32
    %93 = vector.broadcast %cst_23 : f32 to vector<1x128xf32>
    %94 = arith.mulf %93, %18 : vector<1x128xf32>
    %95 = arith.addf %87, %94 : vector<1x128xf32>
    %cst_24 = arith.constant 5.000000e-01 : f32
    %96 = vector.broadcast %cst_24 : f32 to vector<1x128xf32>
    %97 = arith.mulf %96, %19 : vector<1x128xf32>
    %98 = arith.subf %89, %97 : vector<1x128xf32>
    %cst_25 = arith.constant 5.000000e-01 : f32
    %99 = vector.broadcast %cst_25 : f32 to vector<1x128xf32>
    %100 = arith.mulf %99, %19 : vector<1x128xf32>
    %101 = arith.addf %89, %100 : vector<1x128xf32>
    %102 = arith.maximumf %92, %42 : vector<1x128xf32>
    %103 = arith.minimumf %95, %45 : vector<1x128xf32>
    %104 = arith.maximumf %98, %48 : vector<1x128xf32>
    %105 = arith.minimumf %101, %51 : vector<1x128xf32>
    %106 = arith.cmpf olt, %102, %103 : vector<1x128xf32>
    %107 = arith.cmpf olt, %104, %105 : vector<1x128xf32>
    %108 = arith.andi %106, %107 : vector<1x128xi1>
    %109 = arith.subf %103, %102 : vector<1x128xf32>
    %110 = arith.subf %105, %104 : vector<1x128xf32>
    %111 = arith.mulf %109, %110 : vector<1x128xf32>
    %112 = arith.mulf %18, %19 : vector<1x128xf32>
    %113 = arith.addf %112, %52 : vector<1x128xf32>
    %114 = arith.subf %113, %111 : vector<1x128xf32>
    %cst_26 = arith.constant 1.000000e+00 : f32
    %115 = vector.broadcast %cst_26 : f32 to vector<1x128xf32>
    %116 = arith.select %108, %114, %115 : vector<1x128xi1>, vector<1x128xf32>
    %117 = arith.divf %111, %116 : vector<1x128xf32>
    %118 = arith.select %108, %117, %10 : vector<1x128xi1>, vector<1x128xf32>
    %119 = arith.cmpf ogt, %85, %118 : vector<1x128xf32>
    %120 = math.sqrt %23 : vector<1x128xf32>
    %121 = math.sqrt %24 : vector<1x128xf32>
    %122 = arith.subf %11, %21 : vector<1x128xf32>
    %123 = arith.mulf %122, %122 : vector<1x128xf32>
    %124 = arith.subf %12, %22 : vector<1x128xf32>
    %125 = arith.mulf %124, %124 : vector<1x128xf32>
    %126 = arith.addf %123, %125 : vector<1x128xf32>
    %127 = math.sqrt %13 : vector<1x128xf32>
    %128 = arith.subf %127, %120 : vector<1x128xf32>
    %129 = arith.mulf %128, %128 : vector<1x128xf32>
    %130 = arith.addf %126, %129 : vector<1x128xf32>
    %131 = math.sqrt %14 : vector<1x128xf32>
    %132 = arith.subf %131, %121 : vector<1x128xf32>
    %133 = arith.mulf %132, %132 : vector<1x128xf32>
    %134 = arith.addf %130, %133 : vector<1x128xf32>
    %135 = arith.subf %16, %21 : vector<1x128xf32>
    %136 = arith.mulf %135, %135 : vector<1x128xf32>
    %137 = arith.subf %17, %22 : vector<1x128xf32>
    %138 = arith.mulf %137, %137 : vector<1x128xf32>
    %139 = arith.addf %136, %138 : vector<1x128xf32>
    %140 = math.sqrt %18 : vector<1x128xf32>
    %141 = arith.subf %140, %120 : vector<1x128xf32>
    %142 = arith.mulf %141, %141 : vector<1x128xf32>
    %143 = arith.addf %139, %142 : vector<1x128xf32>
    %144 = math.sqrt %19 : vector<1x128xf32>
    %145 = arith.subf %144, %121 : vector<1x128xf32>
    %146 = arith.mulf %145, %145 : vector<1x128xf32>
    %147 = arith.addf %143, %146 : vector<1x128xf32>
    %148 = arith.subf %15, %85 : vector<1x128xf32>
    %149 = arith.mulf %148, %148 : vector<1x128xf32>
    %150 = arith.subf %20, %118 : vector<1x128xf32>
    %151 = arith.mulf %150, %150 : vector<1x128xf32>
    %152 = arith.mulf %20, %20 : vector<1x128xf32>
    %153 = arith.mulf %15, %15 : vector<1x128xf32>
    %154 = arith.select %119, %134, %147 : vector<1x128xi1>, vector<1x128xf32>
    %155 = arith.select %7, %154, %10 : vector<1x128xi1>, vector<1x128xf32>
    %156 = arith.select %119, %149, %151 : vector<1x128xi1>, vector<1x128xf32>
    %157 = arith.select %7, %156, %10 : vector<1x128xi1>, vector<1x128xf32>
    %158 = arith.select %119, %152, %153 : vector<1x128xi1>, vector<1x128xf32>
    %159 = arith.select %7, %158, %10 : vector<1x128xi1>, vector<1x128xf32>
    %160 = arith.addf %28, %159 : vector<1x128xf32>
    %c0_27 = arith.constant 0 : index
    %c0_28 = arith.constant 0 : index
    %161 = vector.load %arg5[%c0_27, %c0_28] : memref<1x128xf32, #tpu.memory_space<vmem>>, vector<1x128xf32>
    %cst_29 = arith.constant 5.000000e+00 : f32
    %162 = vector.broadcast %cst_29 : f32 to vector<1x128xf32>
    %163 = arith.mulf %162, %155 : vector<1x128xf32>
    %164 = arith.addf %163, %157 : vector<1x128xf32>
    %cst_30 = arith.constant 5.000000e-01 : f32
    %165 = vector.broadcast %cst_30 : f32 to vector<1x128xf32>
    %166 = arith.mulf %165, %160 : vector<1x128xf32>
    %167 = arith.addf %164, %166 : vector<1x128xf32>
    %168 = arith.addf %167, %35 : vector<1x128xf32>
    %169 = arith.addf %161, %168 : vector<1x128xf32>
    %c0_31 = arith.constant 0 : index
    %c0_32 = arith.constant 0 : index
    %170 = vector.load %arg5[%c0_31, %c0_32] : memref<1x128xf32, #tpu.memory_space<vmem>>, vector<1x128xf32>
    tpu.vector_store %arg5[%c0_31, %c0_32], %169 {strides = array<i32>} : memref<1x128xf32, #tpu.memory_space<vmem>>, vector<1x128xf32>,
    %c0_i32_33 = arith.constant 0 : i32
    %171 = arith.cmpi eq, %arg1, %c0_i32_33 : i32
    %172 = arith.extui %171 : i1 to i32
    %c0_i32_34 = arith.constant 0 : i32
    %173 = arith.cmpi ne, %172, %c0_i32_34 : i32
    scf.if %173 {
      %c0_35 = arith.constant 0 : index
      %c0_36 = arith.constant 0 : index
      %174 = vector.load %arg5[%c0_35, %c0_36] : memref<1x128xf32, #tpu.memory_space<vmem>>, vector<1x128xf32>
      %cst_37 = arith.constant dense<0.000000e+00> : vector<1xf32>
      %175 = vector.multi_reduction <add>, %174, %cst_37 [1] : vector<1x128xf32> to vector<1xf32>
      %176 = vector.shape_cast %175 : vector<1xf32> to vector<1x1xf32>
      %cst_38 = arith.constant 5.000000e-01 : f32
      %177 = vector.broadcast %cst_38 : f32 to vector<1x1xf32>
      %178 = arith.mulf %176, %177 : vector<1x1xf32>
      %179 = vector.shape_cast %178 : vector<1x1xf32> to vector<1x1x1xf32>
      %c0_39 = arith.constant 0 : index
      %c0_40 = arith.constant 0 : index
      %c0_41 = arith.constant 0 : index
      %180 = vector.load %arg4[%c0_39, %c0_40, %c0_41] : memref<1x1x1xf32, #tpu.memory_space<vmem>>, vector<1x1x1xf32>
      tpu.vector_store %arg4[%c0_39, %c0_40, %c0_41], %179 {strides = array<i32>} : memref<1x1x1xf32, #tpu.memory_space<vmem>>, vector<1x1x1xf32>,
    } else {
    }
    return
  }
  func.func @transform_0(%arg0: i32, %arg1: i32) -> (i32, i32) {
    %c1_i32 = arith.constant 1 : i32
    %0 = arith.muli %arg0, %c1_i32 : i32
    %1 = arith.addi %0, %arg1 : i32
    %c0_i32 = arith.constant 0 : i32
    %c0_i32_0 = arith.constant 0 : i32
    return %c0_i32, %1 : i32, i32
  }
  func.func @transform_1(%arg0: i32, %arg1: i32) -> (i32, i32) {
    %c1_i32 = arith.constant 1 : i32
    %0 = arith.muli %arg0, %c1_i32 : i32
    %1 = arith.addi %0, %arg1 : i32
    %c0_i32 = arith.constant 0 : i32
    %c0_i32_0 = arith.constant 0 : i32
    return %c0_i32, %1 : i32, i32
  }
  func.func @transform_2(%arg0: i32, %arg1: i32) -> (i32, i32, i32) {
    %c0_i32 = arith.constant 0 : i32
    %c0_i32_0 = arith.constant 0 : i32
    %c0_i32_1 = arith.constant 0 : i32
    return %arg0, %c0_i32, %c0_i32_0 : i32, i32, i32
  }
}

</mosaic_0001>

<llo_original>
// kernel: tpu_custom_call.1
$region0: #{tpu_custom_call.1}
  #allocation0 [shape = 'u32[]', space=smem, size = 0x4, offset = 0x4, fixed_abs, tag = 'smem constant byte address 0x4 - core index']
  #allocation1 [shape = 'u32[72,128]{1,0:T(1,128)}', space=vmem, size = 0x9000, scoped, tag = 'internal scratch']
  #allocation2 [shape = 'f32[1,128]{1,0:T(1,128)}', space=vmem, size = 0x200, scoped, tag = 'scratch operand']
  %s0 = inlined_call_operand.hbm [shape: f32[26,128], index: 0, kind: input, shape index: {}]
  %s1 = inlined_call_operand.hbm [shape: f32[26,128], index: 1, kind: input, shape index: {}]
  %s2 = inlined_call_operand.hbm [shape: f32[1,1,1], index: 2, kind: output, shape index: {}]
  %s3 = sld [smem:[#allocation0]]
  $region34: #{tpu_custom_call.1} parent=0
    _
  %s5 = ssub.s32 1, %s3
  %s6 = scalar_select 0, %s5, %s3
  $region1: #{tpu_custom_call.1} parent=0
    #allocation3 [shape = 'u8[16384]{0}', space=vmem, size = 0x4000, scoped, tag = 'input window, operand 0, single buffered']
    #allocation4 [shape = 's32[1]{0}', space=sflag, size = 0x4, scoped, tag = 'scoped memory for tpu_custom_call.1']
    #allocation5 [shape = 's32[1]{0}', space=sflag, size = 0x4, scoped, tag = 'scoped memory for tpu_custom_call.1']
    #allocation6 [shape = 'u8[16384]{0}', space=vmem, size = 0x4000, scoped, tag = 'input window, operand 1, single buffered']
    #allocation7 [shape = 's32[1]{0}', space=sflag, size = 0x4, scoped, tag = 'scoped memory for tpu_custom_call.1']
    #allocation8 [shape = 'u8[512]{0}', space=vmem, size = 0x400, scoped, tag = 'output window, operand 0, single buffered']
    %7 = vsyncpa [#allocation4], 0
    %8 = vsyncpa [#allocation7], 0
    %9 = vsyncpa [#allocation5], 0
    // Predicated region
    $region2: #{tpu_custom_call.1} parent=1 // pred_check
      _
    $region3: #{tpu_custom_call.1} parent=1 // pred_check_branch
      %11 = sbr.rel (0) target = $region5
    $region4: #{tpu_custom_call.1} parent=1 // pred_region
      %s12 = sadd.s32 0, 0
      %14 = vsyncadd [#allocation4], 0
      %s15 = smul.addr %s12, 8
      %s16 = scalar_lea.hbm %s0, %s15
      %s17 = sshll.u32 %s16, 4
      %s18 = int_to_ptr.hbm [resolvable:$true] %s17
      %s19 = sshll.u32 [#allocation3], 4
      %s20 = int_to_ptr.vmem [resolvable:$true] %s19
      %25 = dma.hbm_to_vmem [thread:$0]  %s18, 512, %s20, [#allocation4], 128, 128, 8
    $region5: #{tpu_custom_call.1} parent=1 // pred_fallthru
      _
    // Predicated region
    $region6: #{tpu_custom_call.1} parent=1 // pred_check
      _
    $region7: #{tpu_custom_call.1} parent=1 // pred_check_branch
      %27 = sbr.rel (0) target = $region9
    $region8: #{tpu_custom_call.1} parent=1 // pred_region
      %s28 = sadd.s32 0, 0
      %30 = vsyncadd [#allocation7], 0
      %s31 = smul.addr %s28, 8
      %s32 = scalar_lea.hbm %s1, %s31
      %s33 = sshll.u32 %s32, 4
      %s34 = int_to_ptr.hbm [resolvable:$true] %s33
      %s35 = sshll.u32 [#allocation6], 4
      %s36 = int_to_ptr.vmem [resolvable:$true] %s35
      %41 = dma.hbm_to_vmem [thread:$0]  %s34, 512, %s36, [#allocation7], 128, 128, 8
    $region9: #{tpu_custom_call.1} parent=1 // pred_fallthru
      _
    // Predicated region
    $region10: #{tpu_custom_call.1} parent=1 // pred_check
      _
    $region11: #{tpu_custom_call.1} parent=1 // pred_check_branch
      %43 = sbr.rel (0) target = $region13
    $region12: #{tpu_custom_call.1} parent=1 // pred_region
      %45 = dma.done [#allocation4], 512
    $region13: #{tpu_custom_call.1} parent=1 // pred_fallthru
      _
    // Predicated region
    $region14: #{tpu_custom_call.1} parent=1 // pred_check
      _
    $region15: #{tpu_custom_call.1} parent=1 // pred_check_branch
      %47 = sbr.rel (0) target = $region17
    $region16: #{tpu_custom_call.1} parent=1 // pred_region
      %49 = dma.done [#allocation7], 512
    $region17: #{tpu_custom_call.1} parent=1 // pred_fallthru
      _
    %s50 = sadd.s32 0, 0
    %s51 = sadd.s32 0, 0
    %p52 = scmp.eq.s32.totalorder 0, 0
    // Predicated region
    $region18: #{tpu_custom_call.1} parent=1 // pred_check
      %p53 = pneg %p52
    $region19: #{tpu_custom_call.1} parent=1 // pred_check_branch
      %55 = sbr.rel (%p53) target = $region21
    $region20: #{tpu_custom_call.1} parent=1 // pred_region
      %56 = vst [vmem:[#allocation2] sm:$0x1] 0.0
    $region21: #{tpu_custom_call.1} parent=1 // pred_fallthru
      _
    %v57 = vld [vmem:[#allocation3] sm:$0xff]
    %v58 = vld [vmem:[#allocation3 + $0x8] sm:$0xff]
    %v59 = vld [vmem:[#allocation3 + $0x10] sm:$0xff]
    %v60 = vld [vmem:[#allocation3 + $0x18] sm:$0x3]
    %v61 = vld [vmem:[#allocation6] sm:$0xff]
    %v62 = vld [vmem:[#allocation6 + $0x8] sm:$0xff]
    %v63 = vld [vmem:[#allocation6 + $0x10] sm:$0xff]
    %v64 = vld [vmem:[#allocation6 + $0x18] sm:$0x3]
    %vm65 = vcmp.gt.f32.partialorder %v61, 0.0
    %vm66 = vcmp.eq.f32.partialorder %v61, 0.0
    %v67 = vmul.f32 %v57, %v57
    %v68 = vmul.f32 %v58, %v58
    %v70 = vrot.slane %v68, 5
    %v72 = vadd.f32 %v67, %v70
    %v73 = vsel %vm66, %v72, 0.0
    %v74 = vsub.f32 %v58, %v62
    %v75 = vsub.f32 %v59, %v63
    %v76 = vsub.f32 %v60, %v64
    %v77 = vmul.f32 %v74, %v74
    %v78 = vmul.f32 %v75, %v75
    %v79 = vmul.f32 %v76, %v76
    %vm83 = vcmask 1045504
    %v84 = vrot.slane %v77, 2
    %v85 = vrot.slane %v78, 2
    %v86 = vsel %vm83, %v84, %v85
    %v87 = vrot.slane %v79, 2
    %v88 = vsel %vm83, %v85, %v87
    %v91 = vadd.f32 %v86, %v88
    %v92 = vrot.slane %v91, 4
    %v93 = vadd.f32 %v91, %v92
    %v94 = vrot.slane %v93, 2
    %v95 = vadd.f32 %v93, %v94
    %v96 = vrot.slane %v95, 1
    %v97 = vadd.f32 %v95, %v96
    %v98 = vsel %vm65, %v97, 0.0
    %v99 = vmul.f32 %v61, 0.14285715
    %v100 = vmul.f32 %v61, 0.5
    %v102 = vrot.slane %v100, 2
    %v104 = vsub.f32 %v99, %v102
    %v105 = vadd.f32 %v99, %v102
    %v107 = vrot.slane %v61, 1
    %v109 = vmul.f32 %v61, %v107
    %v110 = vmul.f32 %v57, 0.14285715
    %v111 = vmul.f32 %v57, 0.5
    %v113 = vrot.slane %v111, 2
    %v115 = vsub.f32 %v110, %v113
    %v116 = vadd.f32 %v110, %v113
    %v117 = vmax.f32 %v115, %v104
    %v118 = vmin.f32 %v116, %v105
    %vm119 = vcmp.lt.f32.partialorder %v117, %v118
    %v120 = vsel %vm119, 1, 0
    %v121 = vrot.slane %v120, 1
    %vm122 = vcmp.ne.s32.totalorder %v121, 0
    %vm123 = vmand %vm119, %vm122
    %v124 = vsub.f32 %v118, %v117
    %v126 = vrot.slane %v124, 1
    %v128 = vmul.f32 %v124, %v126
    %v130 = vrot.slane %v57, 1
    %v132 = vmul.f32 %v57, %v130
    %v133 = vadd.f32 %v132, %v109
    %v135 = vrot.slane %v128, 6
    %v137 = vsub.f32 %v133, %v135
    %v139 = vrot.slane %v137, 2
    %v141 = vsel %vm123, %v139, 1.0
    %v142 = vrcp.pop %v141
    %v143 = vmul.f32 %v141, %v142
    %v144 = vsub.f32 1.0, %v143
    %v145 = vmul.f32 %v142, %v144
    %v146 = vadd.f32 %v142, %v145
    %vm147 = vweird.f32 %v141
    %vm148 = vweird.f32 %v142
    %vm149 = vmor %vm147, %vm148
    %v150 = vsel %vm149, %v142, %v146
    %v151 = vand.u32 2147483647, %v141
    %vm152 = vcmp.eq.f32.partialorder %v151, 8.507059e+37
    %v153 = vand.u32 %v141, 2147483648
    %v154 = vor.u32 1.1754944e-38, %v153
    %v155 = vsel %vm152, %v154, %v150
    %v156 = vmul.f32 %v128, %v155
    %v157 = vsel %vm123, %v156, 0.0
    %v158 = vmul.f32 %v58, 0.5
    %v160 = vrot.slane %v158, 2
    %v162 = vsub.f32 %v110, %v160
    %v163 = vadd.f32 %v110, %v160
    %v165 = vrot.slane %v104, 3
    %v167 = vmax.f32 %v115, %v165
    %v169 = vrot.slane %v105, 3
    %v171 = vmin.f32 %v116, %v169
    %v172 = vmax.f32 %v162, %v165
    %v173 = vmin.f32 %v163, %v169
    %vm174 = vcmp.lt.f32.partialorder %v167, %v171
    %vm175 = vcmp.lt.f32.partialorder %v172, %v173
    %v176 = vsel %vm175, 1, 0
    %v177 = vrot.slane %v176, 1
    %vm178 = vcmp.ne.s32.totalorder %v177, 0
    %vm179 = vmand %vm174, %vm178
    %v180 = vsub.f32 %v171, %v167
    %v181 = vsub.f32 %v173, %v172
    %v183 = vrot.slane %v181, 1
    %v185 = vmul.f32 %v180, %v183
    %v187 = vrot.slane %v58, 1
    %v189 = vmul.f32 %v57, %v187
    %v191 = vrot.slane %v109, 3
    %v193 = vadd.f32 %v189, %v191
    %v195 = vrot.slane %v185, 6
    %v197 = vsub.f32 %v193, %v195
    %v199 = vrot.slane %v197, 2
    %v201 = vsel %vm179, %v199, 1.0
    %v202 = vrcp.pop %v201
    %v203 = vmul.f32 %v201, %v202
    %v204 = vsub.f32 1.0, %v203
    %v205 = vmul.f32 %v202, %v204
    %v206 = vadd.f32 %v202, %v205
    %vm207 = vweird.f32 %v201
    %vm208 = vweird.f32 %v202
    %vm209 = vmor %vm207, %vm208
    %v210 = vsel %vm209, %v202, %v206
    %v211 = vand.u32 2147483647, %v201
    %vm212 = vcmp.eq.f32.partialorder %v211, 8.507059e+37
    %v213 = vand.u32 %v201, 2147483648
    %v214 = vor.u32 1.1754944e-38, %v213
    %v215 = vsel %vm212, %v214, %v210
    %v216 = vmul.f32 %v185, %v215
    %v217 = vsel %vm179, %v216, 0.0
    %v219 = vrot.slane %v217, 5
    %vm221 = vcmp.gt.f32.partialorder %v157, %v219
    %v222 = vrsqrt.pop %v61
    %v223 = vmul.f32 %v222, %v61
    %v224 = vmul.f32 %v223, %v222
    %v225 = vmul.f32 0.5, %v224
    %v226 = vsub.f32 1.5, %v225
    %v227 = vmul.f32 %v222, %v226
    %v228 = vmul.f32 %v61, %v227
    %vm229 = vcmp.eq.f32.partialorder %v61, inf
    %v230 = vsel %vm229, %v61, %v228
    %vm231 = vcmp.eq.f32.partialorder %v61, 0.0
    %v232 = vand.u32 %v61, 2147483648
    %v233 = vsel %vm231, %v232, %v230
    %v234 = vsub.f32 %v57, %v61
    %v235 = vmul.f32 %v234, %v234
    %v237 = vrot.slane %v235, 1
    %v239 = vadd.f32 %v235, %v237
    %v240 = vrsqrt.pop %v57
    %v241 = vmul.f32 %v240, %v57
    %v242 = vmul.f32 %v241, %v240
    %v243 = vmul.f32 0.5, %v242
    %v244 = vsub.f32 1.5, %v243
    %v245 = vmul.f32 %v240, %v244
    %v246 = vmul.f32 %v57, %v245
    %vm247 = vcmp.eq.f32.partialorder %v57, inf
    %v248 = vsel %vm247, %v57, %v246
    %vm249 = vcmp.eq.f32.partialorder %v57, 0.0
    %v250 = vand.u32 %v57, 2147483648
    %v251 = vsel %vm249, %v250, %v248
    %v252 = vsub.f32 %v251, %v233
    %v253 = vmul.f32 %v252, %v252
    %v255 = vrot.slane %v253, 2
    %v257 = vadd.f32 %v239, %v255
    %v258 = vrot.slane %v253, 3
    %v260 = vadd.f32 %v257, %v258
    %v261 = vrot.slane %v61, 3
    %v263 = vsub.f32 %v57, %v261
    %v264 = vmul.f32 %v263, %v263
    %v266 = vrot.slane %v264, 1
    %v268 = vadd.f32 %v264, %v266
    %v270 = vrot.slane %v233, 3
    %v272 = vsub.f32 %v251, %v270
    %v273 = vmul.f32 %v272, %v272
    %v275 = vrot.slane %v273, 2
    %v277 = vadd.f32 %v268, %v275
    %v278 = vrsqrt.pop %v58
    %v279 = vmul.f32 %v278, %v58
    %v280 = vmul.f32 %v279, %v278
    %v281 = vmul.f32 0.5, %v280
    %v282 = vsub.f32 1.5, %v281
    %v283 = vmul.f32 %v278, %v282
    %v284 = vmul.f32 %v58, %v283
    %vm285 = vcmp.eq.f32.partialorder %v58, inf
    %v286 = vsel %vm285, %v58, %v284
    %vm287 = vcmp.eq.f32.partialorder %v58, 0.0
    %v288 = vand.u32 %v58, 2147483648
    %v289 = vsel %vm287, %v288, %v286
    %v290 = vsub.f32 %v289, %v270
    %v291 = vmul.f32 %v290, %v290
    %v293 = vrot.slane %v291, 3
    %v295 = vadd.f32 %v277, %v293
    %v297 = vrot.slane %v157, 4
    %v299 = vsub.f32 %v57, %v297
    %v300 = vmul.f32 %v299, %v299
    %v301 = vrot.slane %v217, 4
    %v303 = vsub.f32 %v58, %v301
    %v304 = vmul.f32 %v303, %v303
    %v306 = vrot.slane %v295, 5
    %v308 = vsel %vm221, %v260, %v306
    %v310 = vrot.slane %v308, 4
    %v312 = vsel %vm65, %v310, 0.0
    %v314 = vrot.slane %v300, 4
    %v317 = vrot.slane %v304, 1
    %v319 = vsel %vm221, %v314, %v317
    %v321 = vrot.slane %v319, 4
    %v323 = vsel %vm65, %v321, 0.0
    %v324 = vrot.slane %v68, 1
    %v327 = vrot.slane %v67, 4
    %v329 = vsel %vm221, %v324, %v327
    %v331 = vrot.slane %v329, 4
    %v333 = vsel %vm65, %v331, 0.0
    %v334 = vadd.f32 %v73, %v333
    %v335 = vld [vmem:[#allocation2] sm:$0x1]
    %v336 = vmul.f32 %v312, 5.0
    %v337 = vadd.f32 %v336, %v323
    %v338 = vmul.f32 %v334, 0.5
    %v339 = vadd.f32 %v337, %v338
    %v340 = vadd.f32 %v339, %v98
    %342 = vst [vmem:[#allocation1] sm:$0xff] %v340
    %s343 = scalar_lea.vmem [#allocation1], 4
    %v344 = vld [vmem:[%s343] ss:$9 sm:$0xff]
    %v346 = vadd.f32 %v335, %v344
    %347 = vst [vmem:[#allocation2] sm:$0x1] %v346
    // Predicated region
    $region22: #{tpu_custom_call.1} parent=1 // pred_check
      %p348 = pneg %p52
    $region23: #{tpu_custom_call.1} parent=1 // pred_check_branch
      %350 = sbr.rel (%p348) target = $region25
    $region24: #{tpu_custom_call.1} parent=1 // pred_region
      %v351 = vld [vmem:[#allocation2] sm:$0x1]
      %vm352 = vcmask 1040384
      %v353 = vsel %vm352, %v351, 0.0
      %354 = vadd.xlane.f32.xlu0 %v353
      %v355 = vpop.xlane.xlu0 %354
      %v356 = vmul.f32 %v355, 0.5
      %vm357 = vcmask 0
      %358 = vst.msk [vmem:[#allocation8] sm:$0x1] %vm357, %v356
    $region25: #{tpu_custom_call.1} parent=1 // pred_fallthru
      _
    // Predicated region
    $region26: #{tpu_custom_call.1} parent=1 // pred_check
      _
    $region27: #{tpu_custom_call.1} parent=1 // pred_check_branch
      %360 = sbr.rel (0) target = $region29
    $region28: #{tpu_custom_call.1} parent=1 // pred_region
      %362 = vsyncadd [#allocation5], 0
      %s364 = sshll.u32 [#allocation8], 4
      %s365 = int_to_ptr.vmem [resolvable:$true] %s364
      %s366 = sshll.u32 %s2, 4
      %s367 = int_to_ptr.hbm [resolvable:$true] %s366
      %369 = dma.vmem_to_hbm [thread:$0]  %s365, 16, %s367, [#allocation5]
    $region29: #{tpu_custom_call.1} parent=1 // pred_fallthru
      _
    // Predicated region
    $region30: #{tpu_custom_call.1} parent=1 // pred_check
      _
    $region31: #{tpu_custom_call.1} parent=1 // pred_check_branch
      %371 = sbr.rel (0) target = $region33
    $region32: #{tpu_custom_call.1} parent=1 // pred_region
      %373 = dma.done [#allocation5], 16
    $region33: #{tpu_custom_call.1} parent=1 // pred_fallthru
      _
    %374 = vsyncpa [#allocation4], 1
    %375 = vsyncpa [#allocation7], 1
    %376 = vsyncpa [#allocation5], 1

</llo_original>
